<compile_context>
chip_gen: v7x
topology: tpu7x:2x2x1
jax: 0.10.0
libtpu: 0.0.40
codegen_flags: <defaults>
</compile_context>

<pallas_src>
import functools

import jax
import jax.numpy as jnp
from jax.experimental import pallas as pl
from jax.experimental.pallas import tpu as pltpu


# ----------------------------------------------------------------------------
# Kernel
# ----------------------------------------------------------------------------
def _mlp_kernel(x_ref, w1_ref, b1_ref, w2_ref, b2_ref, o_ref, *, tanh_bf16):
    # fc1 on the MXU: cast the x tile to bf16 *in-kernel* (VPU cast hides
    # under the x DMA / MXU work); accumulate in f32.
    x_bf = x_ref[...].astype(jnp.bfloat16)
    h = jnp.dot(x_bf, w1_ref[...], preferred_element_type=jnp.float32)
    h = h + b1_ref[...]
    if tanh_bf16:
        # v6e / v7x: bf16 EUP tanh + bf16 VPU multiply (2x vreg throughput);
        # the lane reduce below still accumulates in f32.
        a = jnp.tanh(h.astype(jnp.bfloat16))
        prod = (a * w2_ref[...].astype(jnp.bfloat16)).astype(jnp.float32)
    else:
        # v5e has no bf16 EUP/VPU: stay in f32.
        a = jnp.tanh(h)
        prod = a * w2_ref[...]
    # fc2 (N=1) as a VPU multiply + lane reduce (padded hidden columns are 0).
    y_col = jnp.sum(prod, axis=-1, keepdims=True) + b2_ref[0]
    # Lane-dense store: (tile_b, 1) column -> (1, 1, tile_b) row.
    o_ref[...] = jnp.transpose(y_col)[None, :, :].astype(o_ref.dtype)


# ----------------------------------------------------------------------------
# Generation-aware tuning
# ----------------------------------------------------------------------------
def _tpu_generation():
    try:
        kind = jax.devices()[0].device_kind.lower().replace(" ", "")
    except Exception:
        kind = ""
    if "v7" in kind or "7x" in kind:
        return "v7"
    if "v6" in kind:
        return "v6"
    if "v5p" in kind:
        return "v5p"
    if "v5" in kind:  # v5e / "v5 lite"
        return "v5e"
    return "unknown"


def _generation_tuning():
    """Returns (vmem_limit_bytes, tanh_bf16)."""
    gen = _tpu_generation()
    if gen == "v7":
        # 64 MiB physical VMEM per TensorCore: keep headroom.
        return 40 * 1024 * 1024, True
    if gen == "v6":
        return 96 * 1024 * 1024, True
    if gen in ("v5e", "v5p"):
        # 128 MiB physical VMEM; no bf16 EUP/VPU on v5e -> f32 epilogue.
        return 96 * 1024 * 1024, False
    # Unknown chip: conservative defaults.
    return 32 * 1024 * 1024, False


def _pick_tile_b(B, input_size, hid_p, x_itemsize, vmem_limit_bytes):
    """Byte-budget-driven batch tile.

    Targets ~2 MiB of x per pipeline buffer, keeps the working set
    (2 x-buffers + f32 intermediate h + double-buffered resident weights)
    well under the scoped-VMEM limit, keeps the output store lane-dense
    (multiples of 128 rows) and keeps >= 4 grid steps when possible so both
    v7x TensorCores get a double-buffered stream.
    """
    if B < 128:
        # Single full-batch block (block dims equal to the full array dims are
        # always legal); the masked store is unavoidable for tiny batches.
        return B

    # ~2 MiB of x per pipeline buffer.
    tile = (2 * 1024 * 1024) // max(input_size * x_itemsize, 1)

    # VMEM guard (matters most on v7x): resident weights are double-buffered
    # by the default pipeline, so charge 2x their size against the budget.
    weight_bytes = 2 * (input_size * hid_p * 2 + 2 * hid_p * 4)
    usable = max(vmem_limit_bytes // 2 - weight_bytes, 256 * 1024)
    per_row = 2 * input_size * x_itemsize + hid_p * 4 + 2 * 4
    tile = min(tile, usable // per_row, B)
    tile = max(128, (tile // 128) * 128)

    # >= 4 grid steps when possible (v7x: 2 TCs x double-buffering each).
    while tile > 128 and B // tile < 4:
        tile -= 128

    # Largest multiple of 128 (<= tile) that divides B -> unmasked vst.
    t = tile
    while t >= 128:
        if B % t == 0:
            return t
        t -= 128

    # Awkward batch sizes (>= 128 but not divisible by 128): largest divisor
    # of B that is a multiple of 8 (accepting a masked store).
    for cand in range(min(tile, B), 7, -1):
        if B % cand == 0 and cand % 8 == 0:
            return cand
    return B


# ----------------------------------------------------------------------------
# One-time parameter prep (hoisted out of the forward path)
# ----------------------------------------------------------------------------
def prepare_regression_params(w1, b1, w2, b2):
    """Pad hidden to 128 lanes and cast w1 to bf16 -- done once per model.

    w1: (input_size, hidden)   (transposed vs. torch Linear.weight)
    b1: (hidden,)
    w2: (hidden, 1)
    b2: (1,)
    """
    input_size, hidden = w1.shape
    hid_p = ((hidden + 127) // 128) * 128
    pad_h = hid_p - hidden
    return {
        "input_size": int(input_size),
        "hidden": int(hidden),
        "hid_p": int(hid_p),
        # bf16 MXU feed for w1; zero padding keeps the math exact.
        "w1": jnp.pad(w1, ((0, 0), (0, pad_h))).astype(jnp.bfloat16),
        "b1": jnp.pad(b1, (0, pad_h)).astype(jnp.float32).reshape(1, hid_p),
        "w2": jnp.pad(w2.reshape(1, hidden), ((0, 0), (0, pad_h))).astype(jnp.float32),
        "b2": b2.astype(jnp.float32).reshape(1),
    }


# ----------------------------------------------------------------------------
# Forward
# ----------------------------------------------------------------------------
def regression_model_forward(x, params, *, tile_b=None):
    """Fused fc1 -> tanh -> fc2.   x: (B, input_size)  ->  (B, 1) in x.dtype.

    fc1 runs on the MXU with a bf16 feed (f32 accumulation); on v6e/v7x the
    tanh epilogue also runs in bf16.  Expect ~1e-2 deviation vs. f32 torch.
    """
    B, input_size = x.shape
    assert input_size == params["input_size"], "x feature dim mismatch"
    hid_p = params["hid_p"]
    out_dtype = x.dtype
    x_itemsize = jnp.dtype(x.dtype).itemsize

    vmem_limit, tanh_bf16 = _generation_tuning()
    if tile_b is None:
        tile_b = _pick_tile_b(B, input_size, hid_p, x_itemsize, vmem_limit)
    assert B % tile_b == 0, "tile_b must divide the batch"
    assert tile_b == B or tile_b % 8 == 0, "tile_b must be a multiple of 8 or == B"
    num_tiles = B // tile_b

    w1_p, b1_p, w2_p, b2_s = params["w1"], params["b1"], params["w2"], params["b2"]

    flops = 2 * B * input_size * hid_p + 3 * B * hid_p
    bytes_accessed = (
        x.size * x_itemsize
        + w1_p.size * 2 + b1_p.size * 4 + w2_p.size * 4 + 4
        + B * jnp.dtype(out_dtype).itemsize
    )

    kernel = functools.partial(_mlp_kernel, tanh_bf16=tanh_bf16)

    out = pl.pallas_call(
        kernel,
        out_shape=jax.ShapeDtypeStruct((num_tiles, 1, tile_b), out_dtype),
        grid_spec=pltpu.PrefetchScalarGridSpec(
            num_scalar_prefetch=0,
            grid=(num_tiles,),
            in_specs=[
                pl.BlockSpec((tile_b, input_size), lambda i: (i, 0)),   # x tile (pipelined)
                pl.BlockSpec((input_size, hid_p), lambda i: (0, 0)),    # w1 (resident)
                pl.BlockSpec((1, hid_p), lambda i: (0, 0)),             # b1 row (resident)
                pl.BlockSpec((1, hid_p), lambda i: (0, 0)),             # w2 row (resident)
                pl.BlockSpec(memory_space=pltpu.MemorySpace.SMEM),      # b2 scalar
            ],
            out_specs=pl.BlockSpec((1, 1, tile_b), lambda i: (i, 0, 0)),
        ),
        compiler_params=pltpu.CompilerParams(
            dimension_semantics=("parallel",),
            vmem_limit_bytes=vmem_limit,
        ),
        cost_estimate=pl.CostEstimate(
            flops=flops,
            transcendentals=B * hid_p,
            bytes_accessed=bytes_accessed,
        ),
    )(x, w1_p, b1_p, w2_p, b2_s)

    # (num_tiles, 1, tile_b) -> (B, 1): contiguous, preserves batch order.
    return out.reshape(B, 1)


def _torch_linear_init(key, fan_in, shape):
    # PyTorch nn.Linear default init: U(-1/sqrt(fan_in), 1/sqrt(fan_in))
    bound = 1.0 / (fan_in ** 0.5)
    return jax.random.uniform(key, shape, jnp.float32, -bound, bound)


if __name__ == "__main__":
    batch = 512          # exercises the tiled path: 4 x (128-row) tiles
    input_size = 32
    hidden_size = 32

    key = jax.random.PRNGKey(0)
    kx, kw1, kb1, kw2, kb2 = jax.random.split(key, 5)

    x = jax.random.normal(kx, (batch, input_size), jnp.float32)

    # Deterministic parameter init (shapes follow nn.Linear; stored transposed)
    w1 = _torch_linear_init(kw1, input_size, (input_size, hidden_size))
    b1 = _torch_linear_init(kb1, input_size, (hidden_size,))
    w2 = _torch_linear_init(kw2, hidden_size, (hidden_size, 1))
    b2 = _torch_linear_init(kb2, hidden_size, (1,))

    # One-time weight prep, then the fused forward.
    params = prepare_regression_params(w1, b1, w2, b2)
    out = regression_model_forward(x, params)
    out = jax.block_until_ready(out)

    # Reference in plain JAX (f32).  The kernel feeds the MXU in bf16 (f32
    # accumulation) and may run the tanh epilogue in bf16 on v6e/v7x, so the
    # tolerance is loosened accordingly.
    ref = jnp.tanh(x @ w1 + b1) @ w2 + b2
    assert out.shape == (batch, 1)
    assert jnp.allclose(out, ref, atol=4e-2, rtol=4e-2), float(
        jnp.max(jnp.abs(out - ref))
    )

    print("KERNEL_OK")
</pallas_src>

<mosaic_0001>
module attributes {stable_mosaic.version = 11 : i64} {
  func.func @_mlp_kernel(%arg0: i32, %arg1: memref<128x32xf32, #tpu.memory_space<vmem>>, %arg2: memref<32x128xbf16, #tpu.memory_space<vmem>>, %arg3: memref<1x128xf32, #tpu.memory_space<vmem>>, %arg4: memref<1x128xf32, #tpu.memory_space<vmem>>, %arg5: memref<1xf32, #tpu.memory_space<smem>>, %arg6: memref<1x1x128xf32, #tpu.memory_space<vmem>>) attributes {dimension_semantics = [#tpu.dimension_semantics<parallel>], iteration_bounds = array<i64: 4>, scalar_prefetch = 0 : i64, scratch_operands = 0 : i64, tpu.core_type = #tpu.core_type<tc>, window_params = [{transform_indices = @transform_0, window_bounds = array<i64: 128, 32>}, {pipeline_mode = #tpu.pipeline_mode<synchronous>, transform_indices = @transform_1, window_bounds = array<i64: 32, 128>}, {pipeline_mode = #tpu.pipeline_mode<synchronous>, transform_indices = @transform_2, window_bounds = array<i64: 1, 128>}, {pipeline_mode = #tpu.pipeline_mode<synchronous>, transform_indices = @transform_3, window_bounds = array<i64: 1, 128>}, {transform_indices = @transform_4, window_bounds = array<i64: 1>}, {transform_indices = @transform_5, window_bounds = array<i64: 1, 1, 128>}]} {
    %c0 = arith.constant 0 : index
    %c0_0 = arith.constant 0 : index
    %0 = vector.load %arg1[%c0, %c0_0] : memref<128x32xf32, #tpu.memory_space<vmem>>, vector<128x32xf32>
    %1 = arith.truncf %0 : vector<128x32xf32> to vector<128x32xbf16>
    %c0_1 = arith.constant 0 : index
    %c0_2 = arith.constant 0 : index
    %2 = vector.load %arg2[%c0_1, %c0_2] : memref<32x128xbf16, #tpu.memory_space<vmem>>, vector<32x128xbf16>
    %cst = arith.constant dense<0.000000e+00> : vector<128x128xf32>
    %3 = tpu.matmul %1, %2, %cst {dimension_numbers = #tpu.dot_dimension_numbers<[1], [0], [0], [1], [0, 0, 1, 1], [], []>} : vector<128x32xbf16>, vector<32x128xbf16>, vector<128x128xf32> -> vector<128x128xf32>
    %c0_3 = arith.constant 0 : index
    %c0_4 = arith.constant 0 : index
    %4 = vector.load %arg3[%c0_3, %c0_4] : memref<1x128xf32, #tpu.memory_space<vmem>>, vector<1x128xf32>
    %5 = vector.broadcast %4 : vector<1x128xf32> to vector<128x128xf32>
    %6 = arith.addf %3, %5 : vector<128x128xf32>
    %7 = math.tanh %6 : vector<128x128xf32>
    %c0_5 = arith.constant 0 : index
    %c0_6 = arith.constant 0 : index
    %8 = vector.load %arg4[%c0_5, %c0_6] : memref<1x128xf32, #tpu.memory_space<vmem>>, vector<1x128xf32>
    %9 = vector.broadcast %8 : vector<1x128xf32> to vector<128x128xf32>
    %10 = arith.mulf %7, %9 : vector<128x128xf32>
    %cst_7 = arith.constant dense<0.000000e+00> : vector<128xf32>
    %11 = vector.multi_reduction <add>, %10, %cst_7 [1] : vector<128x128xf32> to vector<128xf32>
    %12 = vector.shape_cast %11 : vector<128xf32> to vector<128x1xf32>
    %c0_8 = arith.constant 0 : index
    %13 = memref.load %arg5[%c0_8] : memref<1xf32, #tpu.memory_space<smem>>
    %14 = vector.broadcast %13 : f32 to vector<128x1xf32>
    %15 = arith.addf %12, %14 : vector<128x1xf32>
    %16 = tpu.transpose %15, [1, 0] : vector<128x1xf32> -> vector<1x128xf32>
    %17 = vector.shape_cast %16 : vector<1x128xf32> to vector<1x1x128xf32>
    %c0_9 = arith.constant 0 : index
    %c0_10 = arith.constant 0 : index
    %c0_11 = arith.constant 0 : index
    %18 = vector.load %arg6[%c0_9, %c0_10, %c0_11] : memref<1x1x128xf32, #tpu.memory_space<vmem>>, vector<1x1x128xf32>
    tpu.vector_store %arg6[%c0_9, %c0_10, %c0_11], %17 {strides = array<i32>} : memref<1x1x128xf32, #tpu.memory_space<vmem>>, vector<1x1x128xf32>,
    return
  }
  func.func @transform_0(%arg0: i32) -> (i32, i32) {
    %c0_i32 = arith.constant 0 : i32
    %c0_i32_0 = arith.constant 0 : i32
    return %arg0, %c0_i32 : i32, i32
  }
  func.func @transform_1(%arg0: i32) -> (i32, i32) {
    %c0_i32 = arith.constant 0 : i32
    %c0_i32_0 = arith.constant 0 : i32
    %c0_i32_1 = arith.constant 0 : i32
    return %c0_i32, %c0_i32_0 : i32, i32
  }
  func.func @transform_2(%arg0: i32) -> (i32, i32) {
    %c0_i32 = arith.constant 0 : i32
    %c0_i32_0 = arith.constant 0 : i32
    %c0_i32_1 = arith.constant 0 : i32
    return %c0_i32, %c0_i32_0 : i32, i32
  }
  func.func @transform_3(%arg0: i32) -> (i32, i32) {
    %c0_i32 = arith.constant 0 : i32
    %c0_i32_0 = arith.constant 0 : i32
    %c0_i32_1 = arith.constant 0 : i32
    return %c0_i32, %c0_i32_0 : i32, i32
  }
  func.func @transform_4(%arg0: i32) -> i32 {
    %c0_i32 = arith.constant 0 : i32
    %c0_i32_0 = arith.constant 0 : i32
    return %c0_i32 : i32
  }
  func.func @transform_5(%arg0: i32) -> (i32, i32, i32) {
    %c0_i32 = arith.constant 0 : i32
    %c0_i32_0 = arith.constant 0 : i32
    %c0_i32_1 = arith.constant 0 : i32
    return %arg0, %c0_i32, %c0_i32_0 : i32, i32, i32
  }
}

</mosaic_0001>

<llo_original>
// kernel: tpu_custom_call.1
$region0: #{tpu_custom_call.1}
  #allocation0 [shape = 'u32[]', space=smem, size = 0x4, offset = 0x4, fixed_abs, tag = 'smem constant byte address 0x4 - core index']
  #allocation1 [shape = 'u32[144,128]{1,0:T(1,128)}', space=vmem, size = 0x12000, scoped, tag = 'internal scratch']
  #allocation2 [shape = 'f32[1]{0:T(128)S(6)}', space=smem, size = 0x200, scoped, tag = 'scoped memory for tpu_custom_call.1']
  %s0 = inlined_call_operand.vmem [shape: f32[512,32], index: 0, kind: input, shape index: {}]
  %s1 = inlined_call_operand.vmem [shape: bf16[32,128], index: 1, kind: input, shape index: {}]
  %s2 = inlined_call_operand.vmem [shape: f32[1,128], index: 2, kind: input, shape index: {}]
  %s3 = inlined_call_operand.vmem [shape: f32[1,128], index: 3, kind: input, shape index: {}]
  %s4 = inlined_call_operand.<no memory space> [shape: f32[1], index: 4, kind: input, shape index: {}]
  %s5 = inlined_call_operand.hbm [shape: f32[4,1,128], index: 5, kind: output, shape index: {}]
  %s6 = sld [smem:[#allocation0]]
  $region53: #{tpu_custom_call.1} parent=0
    _
  %s8 = ssub.s32 1, %s6
  %s9 = scalar_select 0, %s8, %s6
  %10 = sst [smem:[#allocation2]] %s4
  $region1: #{tpu_custom_call.1} parent=0
    #allocation3 [shape = 'u8[1024]{0}', space=vmem, size = 0x400, scoped, tag = 'output window, operand 0']
    #allocation4 [shape = 's32[2]{0}', space=sflag, size = 0x8, scoped, tag = 'scoped memory for tpu_custom_call.1']
    %11 = vsyncpa [#allocation4], 0
    %s12 = scalar_lea.sflag [#allocation4], 1
    %13 = vsyncpa %s12, 0
    loop: start=0, step=1, limit=6
    $region2: #{tpu_custom_call.1} parent=1 // loop_pre_header
      _
    $region3: #{tpu_custom_call.1} parent=1 // loop_header
      %s15 = sphi 0, %s19
      %p16 = scmp.ge.s32.totalorder %s15, 6
      %s25 = sphi 0, %s27
      %s28 = sphi 0, %s25
      %s29 = sphi 0, %s28
      %s45 = sphi 0, %s29
      %s49 = sphi 0, %s49
      %s51 = sphi 0, %s49
      %s52 = sphi 0, %s51
      %s66 = sphi 0, %s52
      %s70 = sphi 0, %s70
      %s72 = sphi 0, %s70
      %s73 = sphi 0, %s72
      %s87 = sphi 0, %s73
      %s91 = sphi 0, %s91
      %s93 = sphi 0, %s91
      %s94 = sphi 0, %s93
      %s108 = sphi 0, %s94
      %s112 = sphi 0, %s112
      %s114 = sphi 0, %s112
      %s115 = sphi 0, %s114
      %s129 = sphi 0, %s115
      %s135 = sphi 0, %s137
      %s138 = sphi 0, %s135
      %s139 = sphi 0, %s138
      %s155 = sphi 0, %s139
    $region4: #{tpu_custom_call.1} parent=1 // loop_header_branch
      %18 = sbr.rel (%p16) target = $region8
    $region5: #{tpu_custom_call.1} parent=1 // loop_body
      %s20 = ssub.s32 %s15, 1
      %s21 = ssub.s32 %s15, 2
      %s22 = sadd.s32 %s15, 1
      %s23 = ssub.s32 %s15, %s22
      %p24 = scmp.eq.s32.totalorder %s23, 0
      %s26 = sadd.s32 %s25, 1
      %s27 = scalar_select %p24, %s25, %s26
      %p30 = pneg %p24
      %p31 = scmp.eq.s32.totalorder %s15, 3
      %p32 = por %p30, %p31
      %p33 = scmp.ne.s32.totalorder %s25, %s28
      %p34 = scmp.eq.s32.totalorder %s15, 0
      %p35 = por %p33, %p34
      %p36 = scmp.ne.s32.totalorder %s25, %s28
      %p37 = scmp.eq.s32.totalorder %s20, 3
      %p38 = por %p36, %p37
      %p39 = scmp.ne.s32.totalorder %s28, %s29
      %p40 = scmp.eq.s32.totalorder %s20, 0
      %p41 = por %p39, %p40
      %p42 = scmp.ne.s32.totalorder %s28, %s29
      %p43 = scmp.eq.s32.totalorder %s21, 3
      %p44 = por %p42, %p43
      %p46 = scmp.ne.s32.totalorder %s29, %s45
      %p47 = scmp.eq.s32.totalorder %s21, 0
      %p48 = por %p46, %p47
      %s50 = sadd.s32 %s49, 1
      %p53 = scmp.eq.s32.totalorder %s15, 3
      %p54 = scmp.ne.s32.totalorder %s49, %s51
      %p55 = scmp.eq.s32.totalorder %s15, 0
      %p56 = por %p54, %p55
      %p57 = scmp.ne.s32.totalorder %s49, %s51
      %p58 = scmp.eq.s32.totalorder %s20, 3
      %p59 = por %p57, %p58
      %p60 = scmp.ne.s32.totalorder %s51, %s52
      %p61 = scmp.eq.s32.totalorder %s20, 0
      %p62 = por %p60, %p61
      %p63 = scmp.ne.s32.totalorder %s51, %s52
      %p64 = scmp.eq.s32.totalorder %s21, 3
      %p65 = por %p63, %p64
      %p67 = scmp.ne.s32.totalorder %s52, %s66
      %p68 = scmp.eq.s32.totalorder %s21, 0
      %p69 = por %p67, %p68
      %s71 = sadd.s32 %s70, 1
      %p74 = scmp.eq.s32.totalorder %s15, 3
      %p75 = scmp.ne.s32.totalorder %s70, %s72
      %p76 = scmp.eq.s32.totalorder %s15, 0
      %p77 = por %p75, %p76
      %p78 = scmp.ne.s32.totalorder %s70, %s72
      %p79 = scmp.eq.s32.totalorder %s20, 3
      %p80 = por %p78, %p79
      %p81 = scmp.ne.s32.totalorder %s72, %s73
      %p82 = scmp.eq.s32.totalorder %s20, 0
      %p83 = por %p81, %p82
      %p84 = scmp.ne.s32.totalorder %s72, %s73
      %p85 = scmp.eq.s32.totalorder %s21, 3
      %p86 = por %p84, %p85
      %p88 = scmp.ne.s32.totalorder %s73, %s87
      %p89 = scmp.eq.s32.totalorder %s21, 0
      %p90 = por %p88, %p89
      %s92 = sadd.s32 %s91, 1
      %p95 = scmp.eq.s32.totalorder %s15, 3
      %p96 = scmp.ne.s32.totalorder %s91, %s93
      %p97 = scmp.eq.s32.totalorder %s15, 0
      %p98 = por %p96, %p97
      %p99 = scmp.ne.s32.totalorder %s91, %s93
      %p100 = scmp.eq.s32.totalorder %s20, 3
      %p101 = por %p99, %p100
      %p102 = scmp.ne.s32.totalorder %s93, %s94
      %p103 = scmp.eq.s32.totalorder %s20, 0
      %p104 = por %p102, %p103
      %p105 = scmp.ne.s32.totalorder %s93, %s94
      %p106 = scmp.eq.s32.totalorder %s21, 3
      %p107 = por %p105, %p106
      %p109 = scmp.ne.s32.totalorder %s94, %s108
      %p110 = scmp.eq.s32.totalorder %s21, 0
      %p111 = por %p109, %p110
      %s113 = sadd.s32 %s112, 1
      %p116 = scmp.eq.s32.totalorder %s15, 3
      %p117 = scmp.ne.s32.totalorder %s112, %s114
      %p118 = scmp.eq.s32.totalorder %s15, 0
      %p119 = por %p117, %p118
      %p120 = scmp.ne.s32.totalorder %s112, %s114
      %p121 = scmp.eq.s32.totalorder %s20, 3
      %p122 = por %p120, %p121
      %p123 = scmp.ne.s32.totalorder %s114, %s115
      %p124 = scmp.eq.s32.totalorder %s20, 0
      %p125 = por %p123, %p124
      %p126 = scmp.ne.s32.totalorder %s114, %s115
      %p127 = scmp.eq.s32.totalorder %s21, 3
      %p128 = por %p126, %p127
      %p130 = scmp.ne.s32.totalorder %s115, %s129
      %p131 = scmp.eq.s32.totalorder %s21, 0
      %p132 = por %p130, %p131
      %s133 = ssub.s32 %s15, %s22
      %p134 = scmp.eq.s32.totalorder %s133, 0
      %s136 = sadd.s32 %s135, 1
      %s137 = scalar_select %p134, %s135, %s136
      %p140 = pneg %p134
      %p141 = scmp.eq.s32.totalorder %s15, 3
      %p142 = por %p140, %p141
      %p143 = scmp.ne.s32.totalorder %s135, %s138
      %p144 = scmp.eq.s32.totalorder %s15, 0
      %p145 = por %p143, %p144
      %p146 = scmp.ne.s32.totalorder %s135, %s138
      %p147 = scmp.eq.s32.totalorder %s20, 3
      %p148 = por %p146, %p147
      %p149 = scmp.ne.s32.totalorder %s138, %s139
      %p150 = scmp.eq.s32.totalorder %s20, 0
      %p151 = por %p149, %p150
      %p152 = scmp.ne.s32.totalorder %s138, %s139
      %p153 = scmp.eq.s32.totalorder %s21, 3
      %p154 = por %p152, %p153
      %p156 = scmp.ne.s32.totalorder %s139, %s155
      %p157 = scmp.eq.s32.totalorder %s21, 0
      %p158 = por %p156, %p157
      %p159 = scmp.le.s32.totalorder 1, %s15
      %p160 = scmp.lt.s32.totalorder %s15, 5
      %p161 = pnand %p159, %p160
      %p162 = pneg %p161
      // Predicated region
      $region9: #{tpu_custom_call.1} parent=5 // pred_check
        _
      $region10: #{tpu_custom_call.1} parent=5 // pred_check_branch
        %164 = sbr.rel (%p161) target = $region12
      $region11: #{tpu_custom_call.1} parent=5 // pred_region
        %s165 = ssub.s32 %s15, 1
        // Predicated region
        $region13: #{tpu_custom_call.1} parent=11 // pred_check
          %p166 = pneg %p62
        $region14: #{tpu_custom_call.1} parent=11 // pred_check_branch
          %168 = sbr.rel (%p166) target = $region16
        $region15: #{tpu_custom_call.1} parent=11 // pred_region
          _
        $region16: #{tpu_custom_call.1} parent=11 // pred_fallthru
          _
        // Predicated region
        $region17: #{tpu_custom_call.1} parent=11 // pred_check
          %p169 = pneg %p83
        $region18: #{tpu_custom_call.1} parent=11 // pred_check_branch
          %171 = sbr.rel (%p169) target = $region20
        $region19: #{tpu_custom_call.1} parent=11 // pred_region
          _
        $region20: #{tpu_custom_call.1} parent=11 // pred_fallthru
          _
        // Predicated region
        $region21: #{tpu_custom_call.1} parent=11 // pred_check
          %p172 = pneg %p104
        $region22: #{tpu_custom_call.1} parent=11 // pred_check_branch
          %174 = sbr.rel (%p172) target = $region24
        $region23: #{tpu_custom_call.1} parent=11 // pred_region
          _
        $region24: #{tpu_custom_call.1} parent=11 // pred_fallthru
          _
        // Predicated region
        $region25: #{tpu_custom_call.1} parent=11 // pred_check
          %p175 = pneg %p125
        $region26: #{tpu_custom_call.1} parent=11 // pred_check_branch
          %177 = sbr.rel (%p175) target = $region28
        $region27: #{tpu_custom_call.1} parent=11 // pred_region
          _
        $region28: #{tpu_custom_call.1} parent=11 // pred_fallthru
          _
      $region12: #{tpu_custom_call.1} parent=5 // pred_fallthru
        _
      %p178 = scmp.lt.s32.totalorder %s15, 4
      // Predicated region
      $region29: #{tpu_custom_call.1} parent=5 // pred_check
        %p179 = pneg %p178
      $region30: #{tpu_custom_call.1} parent=5 // pred_check_branch
        %181 = sbr.rel (%p179) target = $region32
      $region31: #{tpu_custom_call.1} parent=5 // pred_region
        // Predicated region
        $region33: #{tpu_custom_call.1} parent=31 // pred_check
          %p182 = pneg %p35
        $region34: #{tpu_custom_call.1} parent=31 // pred_check_branch
          %184 = sbr.rel (%p182) target = $region36
        $region35: #{tpu_custom_call.1} parent=31 // pred_region
          %s185 = smul.u32 16, %s15
          %p186 = scmp.lt.s32.totalorder %s185, 63
          %s187 = scalar_select %p186, %s185, 63
          %s188 = smul.addr %s187, 8
          %s189 = scalar_lea.vmem %s0, %s188
          %s190 = smul.u32 16, %s15
        $region36: #{tpu_custom_call.1} parent=31 // pred_fallthru
          _
      $region32: #{tpu_custom_call.1} parent=5 // pred_fallthru
        _
      %p191 = scmp.le.s32.totalorder 1, %s15
      %p192 = scmp.lt.s32.totalorder %s15, 5
      %p193 = pnand %p191, %p192
      %p194 = pneg %p193
      // Predicated region
      $region37: #{tpu_custom_call.1} parent=5 // pred_check
        _
      $region38: #{tpu_custom_call.1} parent=5 // pred_check_branch
        %196 = sbr.rel (%p193) target = $region40
      $region39: #{tpu_custom_call.1} parent=5 // pred_region
        %s197 = ssub.s32 %s15, 1
        %s198 = smul.u32 16, %s20
        %p199 = scmp.lt.s32.totalorder %s198, 63
        %s200 = scalar_select %p199, %s198, 63
        %s201 = smul.addr %s200, 8
        %s202 = scalar_lea.vmem %s0, %s201
        %p203 = pneg %p41
        %p204 = pneg %p38
        %p205 = pneg %p62
        %p206 = pneg %p59
        %p207 = pneg %p83
        %p208 = pneg %p80
        %p209 = pneg %p104
        %p210 = pneg %p101
        %p211 = pneg %p125
        %p212 = pneg %p122
        %p213 = pneg %p151
        %p214 = pneg %p148
        %s215 = sand.u32 %s138, 1
        %s216 = scalar_lea.sflag [#allocation4], %s215
        %s217 = sand.u32 %s138, 1
        %s218 = scalar_lea.vmem [#allocation3], %s217
        %s219 = smul.u32 16, %s20
        %p220 = scmp.lt.s32.totalorder %s219, 63
        %s221 = scalar_select %p220, %s219, 63
        %s222 = smul.addr %s221, 8
        %s223 = scalar_lea.vmem %s0, %s222
        %s224 = smul.u32 16, %s20
        %v226 = vld [vmem:[%s223] sm:$0xff]
        %v227 = vld [vmem:[%s223 + $0x8] sm:$0xff]
        %v228 = vld [vmem:[%s223 + $0x10] sm:$0xff]
        %v229 = vld [vmem:[%s223 + $0x18] sm:$0xff]
        %v230 = vld [vmem:[%s223 + $0x20] sm:$0xff]
        %v231 = vld [vmem:[%s223 + $0x28] sm:$0xff]
        %v232 = vld [vmem:[%s223 + $0x30] sm:$0xff]
        %v233 = vld [vmem:[%s223 + $0x38] sm:$0xff]
        %v234 = vld [vmem:[%s223 + $0x40] sm:$0xff]
        %v235 = vld [vmem:[%s223 + $0x48] sm:$0xff]
        %v236 = vld [vmem:[%s223 + $0x50] sm:$0xff]
        %v237 = vld [vmem:[%s223 + $0x58] sm:$0xff]
        %v238 = vld [vmem:[%s223 + $0x60] sm:$0xff]
        %v239 = vld [vmem:[%s223 + $0x68] sm:$0xff]
        %v240 = vld [vmem:[%s223 + $0x70] sm:$0xff]
        %v241 = vld [vmem:[%s223 + $0x78] sm:$0xff]
        %v242 = vpack.c.bf16 %v227, %v226
        %v243 = vpack.c.bf16 %v229, %v228
        %v244 = vpack.c.bf16 %v231, %v230
        %v245 = vpack.c.bf16 %v233, %v232
        %v246 = vpack.c.bf16 %v235, %v234
        %v247 = vpack.c.bf16 %v237, %v236
        %v248 = vpack.c.bf16 %v239, %v238
        %v249 = vpack.c.bf16 %v241, %v240
        %v250 = vld [vmem:[%s1] sm:$0xf]
        %v251 = vld [vmem:[%s1 + $0x4] sm:$0xf]
        %v252 = vld [vmem:[%s1 + $0x8] sm:$0xf]
        %v253 = vld [vmem:[%s1 + $0xc] sm:$0xf]
        %v254 = vld [vmem:[%s2] sm:$0x1]
        %v256 = vlaneseq
        %v257 = vshrl.u32 %v256, 7
        %v258 = vsub.s32 0, %v257
        %v259 = vrot.slane %v254, %v258
        %v265 = vunpack.c.l.b16 %v250
        %v266 = vunpack.c.l.b16 %v251
        %v267 = vunpack.c.l.b16 %v252
        %v268 = vunpack.c.l.b16 %v253
        %v269 = vpack.c.b16 %v266, %v265
        %v270 = vpack.c.b16 %v268, %v267
        %vm273 = vcmask 261120
        %v275 = vsel %vm273, %v242, 0
        %v278 = vsel %vm273, %v243, 0
        %v281 = vsel %vm273, %v244, 0
        %v284 = vsel %vm273, %v245, 0
        %v287 = vsel %vm273, %v246, 0
        %v290 = vsel %vm273, %v247, 0
        %v293 = vsel %vm273, %v248, 0
        %v296 = vsel %vm273, %v249, 0
        %298 = vmatprep.subr.bf16.mxu0 0
        %299 = vmatpush1.bf16.msra.mxu0 %v269
        %300 = vmatprep.subr.bf16.mxu0 0
        %301 = vmatpush1.bf16.msra.mxu0 %v270
        %302 = vmatprep.subr.bf16.mxu0 0
        %303 = vmatpush1.bf16.msra.mxu0 0
        %304 = vmatprep.subr.bf16.mxu0 0
        %305 = vmatpush1.bf16.msra.mxu0 0
        %306 = vmatprep.subr.bf16.mxu0 0
        %307 = vmatpush1.bf16.msra.mxu0 0
        %308 = vmatprep.subr.bf16.mxu0 0
        %309 = vmatpush1.bf16.msra.mxu0 0
        %310 = vmatprep.subr.bf16.mxu0 0
        %311 = vmatpush1.bf16.msra.mxu0 0
        %312 = vmatprep.subr.bf16.mxu0 0
        %313 = vmatpush1.bf16.msra.mxu0 0
        %314 = vmatprep.subr.bf16.mxu0 0
        %315 = vmatpush1.bf16.msra.mxu0 0
        %316 = vmatprep.subr.bf16.mxu0 0
        %317 = vmatpush1.bf16.msra.mxu0 0
        %318 = vmatprep.subr.bf16.mxu0 0
        %319 = vmatpush1.bf16.msra.mxu0 0
        %320 = vmatprep.subr.bf16.mxu0 0
        %321 = vmatpush1.bf16.msra.mxu0 0
        %322 = vmatprep.subr.bf16.mxu0 0
        %323 = vmatpush1.bf16.msra.mxu0 0
        %324 = vmatprep.subr.bf16.mxu0 0
        %325 = vmatpush1.bf16.msra.mxu0 0
        %326 = vmatprep.subr.bf16.mxu0 0
        %327 = vmatpush1.bf16.msra.mxu0 0
        %328 = vmatprep.subr.bf16.mxu0 0
        %329 = vmatpush1.bf16.msra.mxu0 0
        %330 = vmatprep.mubr.bf16.mxu0 0
        %331 = vmatmul.mubr.bf16.gmra.mrb[0].mxu0 %v275
        %v332 = vpop.f32.mrb[0].mxu0
        %v333 = vadd.f32 %v259, %v332
        %v334 = vpop.f32.mrb[0].mxu0
        %v335 = vpop.f32.mrb[0].mxu0
        %v336 = vadd.f32 %v259, %v335
        %v337 = vpop.f32.mrb[0].mxu0
        %338 = vmatprep.mubr.bf16.mxu0 0
        %339 = vmatmul.mubr.bf16.gmra.mrb[0].mxu0 %v278
        %v340 = vpop.f32.mrb[0].mxu0
        %v341 = vadd.f32 %v259, %v340
        %v342 = vpop.f32.mrb[0].mxu0
        %v343 = vpop.f32.mrb[0].mxu0
        %v344 = vadd.f32 %v259, %v343
        %v345 = vpop.f32.mrb[0].mxu0
        %346 = vmatprep.mubr.bf16.mxu0 0
        %347 = vmatmul.mubr.bf16.gmra.mrb[0].mxu0 %v281
        %v348 = vpop.f32.mrb[0].mxu0
        %v349 = vadd.f32 %v259, %v348
        %v350 = vpop.f32.mrb[0].mxu0
        %v351 = vpop.f32.mrb[0].mxu0
        %v352 = vadd.f32 %v259, %v351
        %v353 = vpop.f32.mrb[0].mxu0
        %354 = vmatprep.mubr.bf16.mxu0 0
        %355 = vmatmul.mubr.bf16.gmra.mrb[0].mxu0 %v284
        %v356 = vpop.f32.mrb[0].mxu0
        %v357 = vadd.f32 %v259, %v356
        %v358 = vpop.f32.mrb[0].mxu0
        %v359 = vpop.f32.mrb[0].mxu0
        %v360 = vadd.f32 %v259, %v359
        %v361 = vpop.f32.mrb[0].mxu0
        %362 = vmatprep.mubr.bf16.mxu0 0
        %363 = vmatmul.mubr.bf16.gmra.mrb[0].mxu0 %v287
        %v364 = vpop.f32.mrb[0].mxu0
        %v365 = vadd.f32 %v259, %v364
        %v366 = vpop.f32.mrb[0].mxu0
        %v367 = vpop.f32.mrb[0].mxu0
        %v368 = vadd.f32 %v259, %v367
        %v369 = vpop.f32.mrb[0].mxu0
        %370 = vmatprep.mubr.bf16.mxu0 0
        %371 = vmatmul.mubr.bf16.gmra.mrb[0].mxu0 %v290
        %v372 = vpop.f32.mrb[0].mxu0
        %v373 = vadd.f32 %v259, %v372
        %v374 = vpop.f32.mrb[0].mxu0
        %v375 = vpop.f32.mrb[0].mxu0
        %v376 = vadd.f32 %v259, %v375
        %v377 = vpop.f32.mrb[0].mxu0
        %378 = vmatprep.mubr.bf16.mxu0 0
        %379 = vmatmul.mubr.bf16.gmra.mrb[0].mxu0 %v293
        %v380 = vpop.f32.mrb[0].mxu0
        %v381 = vadd.f32 %v259, %v380
        %v382 = vpop.f32.mrb[0].mxu0
        %v383 = vpop.f32.mrb[0].mxu0
        %v384 = vadd.f32 %v259, %v383
        %v385 = vpop.f32.mrb[0].mxu0
        %386 = vmatprep.mubr.bf16.mxu0 0
        %387 = vmatmul.mubr.bf16.gmra.mrb[0].mxu0 %v296
        %v388 = vpop.f32.mrb[0].mxu0
        %v389 = vadd.f32 %v259, %v388
        %v390 = vpop.f32.mrb[0].mxu0
        %v391 = vpop.f32.mrb[0].mxu0
        %v392 = vadd.f32 %v259, %v391
        %v393 = vpop.f32.mrb[0].mxu0
        %394 = vdwg.mxu0
        %v395 = vtanh.pop %v333
        %v396 = vtanh.pop %v336
        %v397 = vtanh.pop %v341
        %v398 = vtanh.pop %v344
        %v399 = vtanh.pop %v349
        %v400 = vtanh.pop %v352
        %v401 = vtanh.pop %v357
        %v402 = vtanh.pop %v360
        %v403 = vtanh.pop %v365
        %v404 = vtanh.pop %v368
        %v405 = vtanh.pop %v373
        %v406 = vtanh.pop %v376
        %v407 = vtanh.pop %v381
        %v408 = vtanh.pop %v384
        %v409 = vtanh.pop %v389
        %v410 = vtanh.pop %v392
        %v411 = vld [vmem:[%s3] sm:$0x1]
        %v413 = vlaneseq
        %v414 = vshrl.u32 %v413, 7
        %v415 = vsub.s32 0, %v414
        %v416 = vrot.slane %v411, %v415
        %v418 = vmul.f32 %v395, %v416
        %v419 = vmul.f32 %v396, %v416
        %v420 = vmul.f32 %v397, %v416
        %v421 = vmul.f32 %v398, %v416
        %v422 = vmul.f32 %v399, %v416
        %v423 = vmul.f32 %v400, %v416
        %v424 = vmul.f32 %v401, %v416
        %v425 = vmul.f32 %v402, %v416
        %v426 = vmul.f32 %v403, %v416
        %v427 = vmul.f32 %v404, %v416
        %v428 = vmul.f32 %v405, %v416
        %v429 = vmul.f32 %v406, %v416
        %v430 = vmul.f32 %v407, %v416
        %v431 = vmul.f32 %v408, %v416
        %v432 = vmul.f32 %v409, %v416
        %v433 = vmul.f32 %v410, %v416
        %434 = vadd.xlane.f32.xlu0 %v418
        %v435 = vpop.xlane.xlu0 %434
        %436 = vadd.xlane.f32.xlu0 %v419
        %v437 = vpop.xlane.xlu0 %436
        %438 = vadd.xlane.f32.xlu0 %v420
        %v439 = vpop.xlane.xlu0 %438
        %440 = vadd.xlane.f32.xlu0 %v421
        %v441 = vpop.xlane.xlu0 %440
        %442 = vadd.xlane.f32.xlu0 %v422
        %v443 = vpop.xlane.xlu0 %442
        %444 = vadd.xlane.f32.xlu0 %v423
        %v445 = vpop.xlane.xlu0 %444
        %446 = vadd.xlane.f32.xlu0 %v424
        %v447 = vpop.xlane.xlu0 %446
        %448 = vadd.xlane.f32.xlu0 %v425
        %v449 = vpop.xlane.xlu0 %448
        %450 = vadd.xlane.f32.xlu0 %v426
        %v451 = vpop.xlane.xlu0 %450
        %452 = vadd.xlane.f32.xlu0 %v427
        %v453 = vpop.xlane.xlu0 %452
        %454 = vadd.xlane.f32.xlu0 %v428
        %v455 = vpop.xlane.xlu0 %454
        %456 = vadd.xlane.f32.xlu0 %v429
        %v457 = vpop.xlane.xlu0 %456
        %458 = vadd.xlane.f32.xlu0 %v430
        %v459 = vpop.xlane.xlu0 %458
        %460 = vadd.xlane.f32.xlu0 %v431
        %v461 = vpop.xlane.xlu0 %460
        %462 = vadd.xlane.f32.xlu0 %v432
        %v463 = vpop.xlane.xlu0 %462
        %464 = vadd.xlane.f32.xlu0 %v433
        %v465 = vpop.xlane.xlu0 %464
        %s466 = sld [smem:[#allocation2]]
        %v467 = vstv %s466
        %v468 = vadd.f32 %v435, %v467
        %v469 = vadd.f32 %v437, %v467
        %v470 = vadd.f32 %v439, %v467
        %v471 = vadd.f32 %v441, %v467
        %v472 = vadd.f32 %v443, %v467
        %v473 = vadd.f32 %v445, %v467
        %v474 = vadd.f32 %v447, %v467
        %v475 = vadd.f32 %v449, %v467
        %v476 = vadd.f32 %v451, %v467
        %v477 = vadd.f32 %v453, %v467
        %v478 = vadd.f32 %v455, %v467
        %v479 = vadd.f32 %v457, %v467
        %v480 = vadd.f32 %v459, %v467
        %v481 = vadd.f32 %v461, %v467
        %v482 = vadd.f32 %v463, %v467
        %v483 = vadd.f32 %v465, %v467
        %484 = vxpose.xlu0.b32.start [1/16] %v468, 128
        %485 = vxpose.xlu0.b32.cont [2/16] %v469, 128
        %486 = vxpose.xlu0.b32.cont [3/16] %v470, 128
        %487 = vxpose.xlu0.b32.cont [4/16] %v471, 128
        %488 = vxpose.xlu0.b32.cont [5/16] %v472, 128
        %489 = vxpose.xlu0.b32.cont [6/16] %v473, 128
        %490 = vxpose.xlu0.b32.cont [7/16] %v474, 128
        %491 = vxpose.xlu0.b32.cont [8/16] %v475, 128
        %492 = vxpose.xlu0.b32.cont [9/16] %v476, 128
        %493 = vxpose.xlu0.b32.cont [10/16] %v477, 128
        %494 = vxpose.xlu0.b32.cont [11/16] %v478, 128
        %495 = vxpose.xlu0.b32.cont [12/16] %v479, 128
        %496 = vxpose.xlu0.b32.cont [13/16] %v480, 128
        %497 = vxpose.xlu0.b32.cont [14/16] %v481, 128
        %498 = vxpose.xlu0.b32.cont [15/16] %v482, 128
        %499 = vxpose.xlu0.b32.end [16/16] %v483, 128
        %v500 = vpop.trf.xlu0
        %v501 = vpop.trf.xlu0
        %v502 = vpop.trf.xlu0
        %v503 = vpop.trf.xlu0
        %v504 = vpop.trf.xlu0
        %v505 = vpop.trf.xlu0
        %v506 = vpop.trf.xlu0
        %v507 = vpop.trf.xlu0
        %v508 = vpop.trf.xlu0
        %v509 = vpop.trf.xlu0
        %v510 = vpop.trf.xlu0
        %v511 = vpop.trf.xlu0
        %v512 = vpop.trf.xlu0
        %v513 = vpop.trf.xlu0
        %v514 = vpop.trf.xlu0
        %v515 = vpop.trf.xlu0
        %516 = vst [vmem:[%s218] sm:$0x1] %v500
        %s517 = sand.u32 %s138, 1
        %s518 = scalar_lea.sflag [#allocation4], %s517
        %s519 = sand.u32 %s138, 1
        %s520 = scalar_lea.vmem [#allocation3], %s519
        // Predicated region
        $region41: #{tpu_custom_call.1} parent=39 // pred_check
          %p521 = pneg %p148
        $region42: #{tpu_custom_call.1} parent=39 // pred_check_branch
          %523 = sbr.rel (%p521) target = $region44
        $region43: #{tpu_custom_call.1} parent=39 // pred_region
          %s525 = ssub.s32 16, 16
          %526 = vsyncadd %s518, %s525
          %s527 = smul.addr %s20, 16
          %s528 = scalar_lea.hbm %s5, %s527
          %s530 = sshll.u32 %s520, 4
          %s531 = int_to_ptr.vmem [resolvable:$true] %s530
          %533 = dma.vmem_to_hbm [thread:$0]  %s531, 16, %s528, %s518
        $region44: #{tpu_custom_call.1} parent=39 // pred_fallthru
          _
      $region40: #{tpu_custom_call.1} parent=5 // pred_fallthru
        _
      %p534 = scmp.le.s32.totalorder 2, %s15
      // Predicated region
      $region45: #{tpu_custom_call.1} parent=5 // pred_check
        %p535 = pneg %p534
      $region46: #{tpu_custom_call.1} parent=5 // pred_check_branch
        %537 = sbr.rel (%p535) target = $region48
      $region47: #{tpu_custom_call.1} parent=5 // pred_region
        %s538 = ssub.s32 %s15, 2
        // Predicated region
        $region49: #{tpu_custom_call.1} parent=47 // pred_check
          %p539 = pneg %p154
        $region50: #{tpu_custom_call.1} parent=47 // pred_check_branch
          %541 = sbr.rel (%p539) target = $region52
        $region51: #{tpu_custom_call.1} parent=47 // pred_region
          %s542 = sand.u32 %s139, 1
          %s543 = scalar_lea.sflag [#allocation4], %s542
          %s544 = sand.u32 %s139, 1
          %s545 = scalar_lea.vmem [#allocation3], %s544
          %546 = dma.done %s543, 16
        $region52: #{tpu_custom_call.1} parent=47 // pred_fallthru
          _
      $region48: #{tpu_custom_call.1} parent=5 // pred_fallthru
        _
    $region6: #{tpu_custom_call.1} parent=1 // loop_footer
      %s19 = sadd.s32 1, %s15
    $region7: #{tpu_custom_call.1} parent=1 // loop_footer_branch
      %14 = sbr.rel target = $region3
    $region8: #{tpu_custom_call.1} parent=1 // loop_exit
      _
    %547 = vsyncpa [#allocation4], 1
    %s548 = scalar_lea.sflag [#allocation4], 1
    %549 = vsyncpa %s548, 1

</llo_original>
